<compile_context>
chip_gen: v6e
topology: v6e:2x2x1
jax: 0.10.0
libtpu: 0.0.40
codegen_flags: <defaults>
</compile_context>

<pallas_src>
import jax
import jax.numpy as jnp
from jax import lax
from jax.experimental import pallas as pl
from jax.experimental.pallas import tpu as pltpu

_CHUNK_R = 32          # sublane rows per compute chunk (32*128 f32 = 4 vregs/temp)
_MAX_TILE_R = 2048     # rows of 128 lanes per grid step (3 MB/buffer)


def _epe_kernel(I_s, nIi_s, w_ref, out_ref):
    """One (3, tile_r, 128) tile of the Euler-Poincare RHS.

    I_s   : (9,) f32 SMEM scalars, row-major I
    nIi_s : (9,) f32 SMEM scalars, row-major (-I_inv)
    w_ref : (3, tile_r, 128) angular velocity (SoA, lane-packed)
    out_ref: (3, tile_r, 128) dw/dt
    """
    # Hoist SMEM scalar reads out of the strip-mined loop.
    i00, i01, i02 = I_s[0], I_s[1], I_s[2]
    i10, i11, i12 = I_s[3], I_s[4], I_s[5]
    i20, i21, i22 = I_s[6], I_s[7], I_s[8]
    j00, j01, j02 = nIi_s[0], nIi_s[1], nIi_s[2]
    j10, j11, j12 = nIi_s[3], nIi_s[4], nIi_s[5]
    j20, j21, j22 = nIi_s[6], nIi_s[7], nIi_s[8]

    n_chunks = w_ref.shape[1] // _CHUNK_R

    def body(c, carry):
        r0 = pl.multiple_of(c * _CHUNK_R, _CHUNK_R)
        w0 = w_ref[0, pl.ds(r0, _CHUNK_R), :]        # dense (32, 128) tiles
        w1 = w_ref[1, pl.ds(r0, _CHUNK_R), :]
        w2 = w_ref[2, pl.ds(r0, _CHUNK_R), :]

        # a = I @ w  -> 9 broadcast FMAs on the VPU
        a0 = i00 * w0 + i01 * w1 + i02 * w2
        a1 = i10 * w0 + i11 * w1 + i12 * w2
        a2 = i20 * w0 + i21 * w1 + i22 * w2

        # c = hat(w) @ a == w x a   (pure element-wise VPU math)
        c0 = w1 * a2 - w2 * a1
        c1 = w2 * a0 - w0 * a2
        c2 = w0 * a1 - w1 * a0

        # out = (-I_inv) @ c  -> negation folded into prefetched scalars
        out_ref[0, pl.ds(r0, _CHUNK_R), :] = j00 * c0 + j01 * c1 + j02 * c2
        out_ref[1, pl.ds(r0, _CHUNK_R), :] = j10 * c0 + j11 * c1 + j12 * c2
        out_ref[2, pl.ds(r0, _CHUNK_R), :] = j20 * c0 + j21 * c1 + j22 * c2
        return carry

    lax.fori_loop(0, n_chunks, body, None, unroll=min(4, n_chunks))


def euler_poincare_rhs_soa(w_soa, I, I_inv, *, tile_r=None):
    """Core kernel on already-packed SoA data.

    w_soa: (3, R, 128) f32 with R a multiple of _CHUNK_R. Returns (3, R, 128).
    Callers that keep their state in this layout pay zero wrapper HBM copies.
    """
    three, R, L = w_soa.shape
    assert three == 3 and L == 128 and R % _CHUNK_R == 0
    if tile_r is None:
        tile_r = min(_MAX_TILE_R, R)
    assert tile_r % _CHUNK_R == 0 and R % tile_r == 0

    I_flat = I.astype(jnp.float32).reshape(9)
    nIi_flat = (-I_inv).astype(jnp.float32).reshape(9)

    return pl.pallas_call(
        _epe_kernel,
        out_shape=jax.ShapeDtypeStruct((3, R, 128), jnp.float32),
        grid_spec=pltpu.PrefetchScalarGridSpec(
            num_scalar_prefetch=2,                 # I, -I_inv -> SMEM
            grid=(R // tile_r,),
            in_specs=[
                pl.BlockSpec((3, tile_r, 128), lambda i, I_s, nIi_s: (0, i, 0)),
            ],
            out_specs=pl.BlockSpec((3, tile_r, 128), lambda i, I_s, nIi_s: (0, i, 0)),
        ),
        compiler_params=pltpu.CompilerParams(
            dimension_semantics=("parallel",),
            vmem_limit_bytes=32 << 20,             # 12 MB working set + headroom
        ),
    )(I_flat, nIi_flat, w_soa)


def euler_poincare_forward(t, w, I, I_inv, *, max_tile_r=_MAX_TILE_R):
    """Mirrors EulerPoincareEquation.forward(t, w).

    t: unused (interface parity with the PyTorch module)
    w: (B, 3) float32 angular velocities
    Returns (B, 3) float32 = -I_inv @ (hat(w) @ (I @ w)).
    """
    del t  # unused by the forward pass, exactly as in the PyTorch module
    B = w.shape[0]
    assert max_tile_r % _CHUNK_R == 0

    # --- layout plumbing only (use euler_poincare_rhs_soa to avoid it) ------
    r = pl.cdiv(B, 128)                         # 128-lane rows needed
    r_aligned = _CHUNK_R * pl.cdiv(r, _CHUNK_R)  # chunk-aligned row count
    tile_r = min(max_tile_r, r_aligned)
    # v7x megacore: prefer >= 2 grid steps when there is enough work so both
    # TensorCores get tiles (no-op on v5e/v6e which have a single TC).
    if r_aligned > _CHUNK_R and r_aligned <= max_tile_r:
        tile_r = _CHUNK_R * pl.cdiv(r_aligned // 2, _CHUNK_R)
    r_pad = tile_r * pl.cdiv(r_aligned, tile_r)
    b_pad = r_pad * 128

    # SoA + tail padding (zero tail -> exactly zero outputs, sliced off below)
    w_soa = jnp.pad(
        w.astype(jnp.float32).T, ((0, 0), (0, b_pad - B))
    ).reshape(3, r_pad, 128)

    out_soa = euler_poincare_rhs_soa(w_soa, I, I_inv, tile_r=tile_r)
    return out_soa.reshape(3, b_pad)[:, :B].T   # back to (B, 3)


def _reference(w, I, I_inv):
    """Pure-JAX reference mirroring the PyTorch module exactly."""
    def hat(v):  # (B,3) -> (B,3,3)
        z = jnp.zeros_like(v[:, 0])
        return jnp.stack(
            [jnp.stack([z, -v[:, 2], v[:, 1]], axis=-1),
             jnp.stack([v[:, 2], z, -v[:, 0]], axis=-1),
             jnp.stack([-v[:, 1], v[:, 0], z], axis=-1)],
            axis=-2,
        )
    w_v = w[:, :, None]                                   # (B,3,1)
    out = -jnp.matmul(I_inv[None], jnp.matmul(hat(w), jnp.matmul(I[None], w_v)))
    return out[:, :, 0]


if __name__ == "__main__":
    # 'model1' inertia matrix from the module's __init__.
    I = jnp.array([[12.0, -5.0, 7.0],
                   [-5.0, 20.0, -2.0],
                   [7.0, -2.0, 5.0]], dtype=jnp.float32)
    I_inv = jnp.linalg.inv(I).astype(jnp.float32)

    t = jnp.zeros((), dtype=jnp.float32)  # unused by forward, as in PyTorch

    # Small deterministic test: B = 2
    B = 2
    w = jax.random.normal(jax.random.PRNGKey(0), (B, 3), dtype=jnp.float32)
    out = jax.block_until_ready(euler_poincare_forward(t, w, I, I_inv))
    ref = _reference(w, I, I_inv)
    assert out.shape == (B, 3) and out.dtype == jnp.float32
    assert jnp.allclose(out, ref, rtol=1e-5, atol=1e-5), (out, ref)

    # Second check exercising padding for B not divisible by 128.
    B2 = 300
    w2 = jax.random.normal(jax.random.PRNGKey(1), (B2, 3), dtype=jnp.float32)
    out2 = jax.block_until_ready(euler_poincare_forward(t, w2, I, I_inv))
    ref2 = _reference(w2, I, I_inv)
    assert out2.shape == (B2, 3)
    assert jnp.allclose(out2, ref2, rtol=1e-5, atol=1e-5)

    # Third check: multi-step grid path (>= 2 tiles, exercises megacore split).
    B3 = 9000
    w3 = jax.random.normal(jax.random.PRNGKey(2), (B3, 3), dtype=jnp.float32)
    out3 = jax.block_until_ready(euler_poincare_forward(t, w3, I, I_inv))
    ref3 = _reference(w3, I, I_inv)
    assert jnp.allclose(out3, ref3, rtol=1e-5, atol=1e-5)

    print("KERNEL_OK")
</pallas_src>

<mosaic_0001>
module attributes {stable_mosaic.version = 11 : i64} {
  func.func @_epe_kernel(%arg0: i32, %arg1: memref<9xf32, #tpu.memory_space<smem>>, %arg2: memref<9xf32, #tpu.memory_space<smem>>, %arg3: memref<3x32x128xf32, #tpu.memory_space<vmem>>, %arg4: memref<3x32x128xf32, #tpu.memory_space<vmem>>) attributes {dimension_semantics = [#tpu.dimension_semantics<parallel>], iteration_bounds = array<i64: 1>, scalar_prefetch = 2 : i64, scratch_operands = 0 : i64, tpu.core_type = #tpu.core_type<tc>, window_params = [{transform_indices = @transform_0, window_bounds = array<i64: 3, 32, 128>}, {transform_indices = @transform_1, window_bounds = array<i64: 3, 32, 128>}]} {
    %c0 = arith.constant 0 : index
    %0 = memref.load %arg1[%c0] : memref<9xf32, #tpu.memory_space<smem>>
    %c1 = arith.constant 1 : index
    %1 = memref.load %arg1[%c1] : memref<9xf32, #tpu.memory_space<smem>>
    %c2 = arith.constant 2 : index
    %2 = memref.load %arg1[%c2] : memref<9xf32, #tpu.memory_space<smem>>
    %c3 = arith.constant 3 : index
    %3 = memref.load %arg1[%c3] : memref<9xf32, #tpu.memory_space<smem>>
    %c4 = arith.constant 4 : index
    %4 = memref.load %arg1[%c4] : memref<9xf32, #tpu.memory_space<smem>>
    %c5 = arith.constant 5 : index
    %5 = memref.load %arg1[%c5] : memref<9xf32, #tpu.memory_space<smem>>
    %c6 = arith.constant 6 : index
    %6 = memref.load %arg1[%c6] : memref<9xf32, #tpu.memory_space<smem>>
    %c7 = arith.constant 7 : index
    %7 = memref.load %arg1[%c7] : memref<9xf32, #tpu.memory_space<smem>>
    %c8 = arith.constant 8 : index
    %8 = memref.load %arg1[%c8] : memref<9xf32, #tpu.memory_space<smem>>
    %c0_0 = arith.constant 0 : index
    %9 = memref.load %arg2[%c0_0] : memref<9xf32, #tpu.memory_space<smem>>
    %c1_1 = arith.constant 1 : index
    %10 = memref.load %arg2[%c1_1] : memref<9xf32, #tpu.memory_space<smem>>
    %c2_2 = arith.constant 2 : index
    %11 = memref.load %arg2[%c2_2] : memref<9xf32, #tpu.memory_space<smem>>
    %c3_3 = arith.constant 3 : index
    %12 = memref.load %arg2[%c3_3] : memref<9xf32, #tpu.memory_space<smem>>
    %c4_4 = arith.constant 4 : index
    %13 = memref.load %arg2[%c4_4] : memref<9xf32, #tpu.memory_space<smem>>
    %c5_5 = arith.constant 5 : index
    %14 = memref.load %arg2[%c5_5] : memref<9xf32, #tpu.memory_space<smem>>
    %c6_6 = arith.constant 6 : index
    %15 = memref.load %arg2[%c6_6] : memref<9xf32, #tpu.memory_space<smem>>
    %c7_7 = arith.constant 7 : index
    %16 = memref.load %arg2[%c7_7] : memref<9xf32, #tpu.memory_space<smem>>
    %c8_8 = arith.constant 8 : index
    %17 = memref.load %arg2[%c8_8] : memref<9xf32, #tpu.memory_space<smem>>
    %c0_i32 = arith.constant 0 : i32
    %c32_i32 = arith.constant 32 : i32
    %18 = arith.muli %c0_i32, %c32_i32 : i32
    %19 = tpu.assume_multiple %18, 32 : i32
    %c0_9 = arith.constant 0 : index
    %20 = arith.index_cast %19 : i32 to index
    %c0_10 = arith.constant 0 : index
    %21 = vector.load %arg3[%c0_9, %20, %c0_10] : memref<3x32x128xf32, #tpu.memory_space<vmem>>, vector<1x32x128xf32>
    %22 = vector.shape_cast %21 : vector<1x32x128xf32> to vector<32x128xf32>
    %c1_11 = arith.constant 1 : index
    %23 = arith.index_cast %19 : i32 to index
    %c0_12 = arith.constant 0 : index
    %24 = vector.load %arg3[%c1_11, %23, %c0_12] : memref<3x32x128xf32, #tpu.memory_space<vmem>>, vector<1x32x128xf32>
    %25 = vector.shape_cast %24 : vector<1x32x128xf32> to vector<32x128xf32>
    %c2_13 = arith.constant 2 : index
    %26 = arith.index_cast %19 : i32 to index
    %c0_14 = arith.constant 0 : index
    %27 = vector.load %arg3[%c2_13, %26, %c0_14] : memref<3x32x128xf32, #tpu.memory_space<vmem>>, vector<1x32x128xf32>
    %28 = vector.shape_cast %27 : vector<1x32x128xf32> to vector<32x128xf32>
    %29 = vector.broadcast %0 : f32 to vector<32x128xf32>
    %30 = arith.mulf %29, %22 : vector<32x128xf32>
    %31 = vector.broadcast %1 : f32 to vector<32x128xf32>
    %32 = arith.mulf %31, %25 : vector<32x128xf32>
    %33 = arith.addf %30, %32 : vector<32x128xf32>
    %34 = vector.broadcast %2 : f32 to vector<32x128xf32>
    %35 = arith.mulf %34, %28 : vector<32x128xf32>
    %36 = arith.addf %33, %35 : vector<32x128xf32>
    %37 = vector.broadcast %3 : f32 to vector<32x128xf32>
    %38 = arith.mulf %37, %22 : vector<32x128xf32>
    %39 = vector.broadcast %4 : f32 to vector<32x128xf32>
    %40 = arith.mulf %39, %25 : vector<32x128xf32>
    %41 = arith.addf %38, %40 : vector<32x128xf32>
    %42 = vector.broadcast %5 : f32 to vector<32x128xf32>
    %43 = arith.mulf %42, %28 : vector<32x128xf32>
    %44 = arith.addf %41, %43 : vector<32x128xf32>
    %45 = vector.broadcast %6 : f32 to vector<32x128xf32>
    %46 = arith.mulf %45, %22 : vector<32x128xf32>
    %47 = vector.broadcast %7 : f32 to vector<32x128xf32>
    %48 = arith.mulf %47, %25 : vector<32x128xf32>
    %49 = arith.addf %46, %48 : vector<32x128xf32>
    %50 = vector.broadcast %8 : f32 to vector<32x128xf32>
    %51 = arith.mulf %50, %28 : vector<32x128xf32>
    %52 = arith.addf %49, %51 : vector<32x128xf32>
    %53 = arith.mulf %25, %52 : vector<32x128xf32>
    %54 = arith.mulf %28, %44 : vector<32x128xf32>
    %55 = arith.subf %53, %54 : vector<32x128xf32>
    %56 = arith.mulf %28, %36 : vector<32x128xf32>
    %57 = arith.mulf %22, %52 : vector<32x128xf32>
    %58 = arith.subf %56, %57 : vector<32x128xf32>
    %59 = arith.mulf %22, %44 : vector<32x128xf32>
    %60 = arith.mulf %25, %36 : vector<32x128xf32>
    %61 = arith.subf %59, %60 : vector<32x128xf32>
    %62 = vector.broadcast %9 : f32 to vector<32x128xf32>
    %63 = arith.mulf %62, %55 : vector<32x128xf32>
    %64 = vector.broadcast %10 : f32 to vector<32x128xf32>
    %65 = arith.mulf %64, %58 : vector<32x128xf32>
    %66 = arith.addf %63, %65 : vector<32x128xf32>
    %67 = vector.broadcast %11 : f32 to vector<32x128xf32>
    %68 = arith.mulf %67, %61 : vector<32x128xf32>
    %69 = arith.addf %66, %68 : vector<32x128xf32>
    %c0_15 = arith.constant 0 : index
    %70 = arith.index_cast %19 : i32 to index
    %c0_16 = arith.constant 0 : index
    %71 = vector.load %arg4[%c0_15, %70, %c0_16] : memref<3x32x128xf32, #tpu.memory_space<vmem>>, vector<1x32x128xf32>
    %72 = vector.shape_cast %71 : vector<1x32x128xf32> to vector<32x128xf32>
    %73 = vector.shape_cast %69 : vector<32x128xf32> to vector<1x32x128xf32>
    tpu.vector_store %arg4[%c0_15, %70, %c0_16], %73 {strides = array<i32>} : memref<3x32x128xf32, #tpu.memory_space<vmem>>, vector<1x32x128xf32>,
    %74 = vector.broadcast %12 : f32 to vector<32x128xf32>
    %75 = arith.mulf %74, %55 : vector<32x128xf32>
    %76 = vector.broadcast %13 : f32 to vector<32x128xf32>
    %77 = arith.mulf %76, %58 : vector<32x128xf32>
    %78 = arith.addf %75, %77 : vector<32x128xf32>
    %79 = vector.broadcast %14 : f32 to vector<32x128xf32>
    %80 = arith.mulf %79, %61 : vector<32x128xf32>
    %81 = arith.addf %78, %80 : vector<32x128xf32>
    %c1_17 = arith.constant 1 : index
    %82 = arith.index_cast %19 : i32 to index
    %c0_18 = arith.constant 0 : index
    %83 = vector.load %arg4[%c1_17, %82, %c0_18] : memref<3x32x128xf32, #tpu.memory_space<vmem>>, vector<1x32x128xf32>
    %84 = vector.shape_cast %83 : vector<1x32x128xf32> to vector<32x128xf32>
    %85 = vector.shape_cast %81 : vector<32x128xf32> to vector<1x32x128xf32>
    tpu.vector_store %arg4[%c1_17, %82, %c0_18], %85 {strides = array<i32>} : memref<3x32x128xf32, #tpu.memory_space<vmem>>, vector<1x32x128xf32>,
    %86 = vector.broadcast %15 : f32 to vector<32x128xf32>
    %87 = arith.mulf %86, %55 : vector<32x128xf32>
    %88 = vector.broadcast %16 : f32 to vector<32x128xf32>
    %89 = arith.mulf %88, %58 : vector<32x128xf32>
    %90 = arith.addf %87, %89 : vector<32x128xf32>
    %91 = vector.broadcast %17 : f32 to vector<32x128xf32>
    %92 = arith.mulf %91, %61 : vector<32x128xf32>
    %93 = arith.addf %90, %92 : vector<32x128xf32>
    %c2_19 = arith.constant 2 : index
    %94 = arith.index_cast %19 : i32 to index
    %c0_20 = arith.constant 0 : index
    %95 = vector.load %arg4[%c2_19, %94, %c0_20] : memref<3x32x128xf32, #tpu.memory_space<vmem>>, vector<1x32x128xf32>
    %96 = vector.shape_cast %95 : vector<1x32x128xf32> to vector<32x128xf32>
    %97 = vector.shape_cast %93 : vector<32x128xf32> to vector<1x32x128xf32>
    tpu.vector_store %arg4[%c2_19, %94, %c0_20], %97 {strides = array<i32>} : memref<3x32x128xf32, #tpu.memory_space<vmem>>, vector<1x32x128xf32>,
    %c1_i32 = arith.constant 1 : i32
    return
  }
  func.func @transform_0(%arg0: i32, %arg1: memref<9xf32, #tpu.memory_space<smem>>, %arg2: memref<9xf32, #tpu.memory_space<smem>>) -> (i32, i32, i32) {
    %c0_i32 = arith.constant 0 : i32
    %c0_i32_0 = arith.constant 0 : i32
    %c0_i32_1 = arith.constant 0 : i32
    return %c0_i32, %arg0, %c0_i32_0 : i32, i32, i32
  }
  func.func @transform_1(%arg0: i32, %arg1: memref<9xf32, #tpu.memory_space<smem>>, %arg2: memref<9xf32, #tpu.memory_space<smem>>) -> (i32, i32, i32) {
    %c0_i32 = arith.constant 0 : i32
    %c0_i32_0 = arith.constant 0 : i32
    %c0_i32_1 = arith.constant 0 : i32
    return %c0_i32, %arg0, %c0_i32_0 : i32, i32, i32
  }
}

</mosaic_0001>

<llo_original>
// kernel: tpu_custom_call.1
$region0: #{tpu_custom_call.1}
  #allocation0 [shape = 'u32[]', space=smem, size = 0x4, offset = 0x4, fixed_abs, tag = 'smem constant byte address 0x4 - core index']
  #allocation1 [shape = 'u32[144,128]{1,0:T(1,128)}', space=vmem, size = 0x12000, scoped, tag = 'internal scratch']
  #allocation2 [shape = 's32[1]{0}', space=sflag, size = 0x4, scoped, tag = 'scoped memory for tpu_custom_call.1']
  #allocation3 [shape = 'u8[512]{0}', space=smem, size = 0x200, scoped, tag = 'prefetched SMEM operand 0']
  #allocation4 [shape = 'u8[512]{0}', space=smem, size = 0x200, scoped, tag = 'prefetched SMEM operand 1']
  %s0 = inlined_call_operand.hbm [shape: f32[9], index: 0, kind: input, shape index: {}]
  %s1 = inlined_call_operand.vmem [shape: f32[9], index: 1, kind: input, shape index: {}]
  %s2 = inlined_call_operand.hbm [shape: f32[3,32,128], index: 2, kind: input, shape index: {}]
  %s3 = inlined_call_operand.hbm [shape: f32[3,32,128], index: 3, kind: output, shape index: {}]
  %s4 = sld [smem:[#allocation0]]
  $region18: #{tpu_custom_call.1} parent=0
    _
  %s6 = ssub.s32 1, %s4
  %s7 = scalar_select 0, %s6, %s4
  %9 = dma.hbm_to_smem %s0, 16, [#allocation3], [#allocation2]
  %s10 = sshll.u32 %s1, 4
  %s11 = int_to_ptr.vmem [resolvable:$true] %s10
  %13 = dma.vmem_to_smem %s11, 16, [#allocation4], [#allocation2]
  %14 = dma.done [#allocation2], 32
  %15 = sfence
  $region1: #{tpu_custom_call.1} parent=0
    #allocation5 [shape = 'u8[49152]{0}', space=vmem, size = 0xc000, scoped, tag = 'input window, operand 2, single buffered']
    #allocation6 [shape = 's32[1]{0}', space=sflag, size = 0x4, scoped, tag = 'scoped memory for tpu_custom_call.1']
    #allocation7 [shape = 's32[1]{0}', space=sflag, size = 0x4, scoped, tag = 'scoped memory for tpu_custom_call.1']
    #allocation8 [shape = 'u8[49152]{0}', space=vmem, size = 0xc000, scoped, tag = 'output window, operand 0, single buffered']
    %16 = vsyncpa [#allocation6], 0
    %17 = vsyncpa [#allocation7], 0
    // Predicated region
    $region2: #{tpu_custom_call.1} parent=1 // pred_check
      _
    $region3: #{tpu_custom_call.1} parent=1 // pred_check_branch
      %19 = sbr.rel (0) target = $region5
    $region4: #{tpu_custom_call.1} parent=1 // pred_region
      %s21 = ssub.s32 1536, 1536
      %22 = vsyncadd [#allocation6], %s21
      %s23 = sshll.u32 [#allocation5], 4
      %s24 = int_to_ptr.vmem [resolvable:$true] %s23
      %29 = dma.hbm_to_vmem [thread:$0]  %s2, 1536, %s24, [#allocation6], 128, 128, 8
    $region5: #{tpu_custom_call.1} parent=1 // pred_fallthru
      _
    // Predicated region
    $region6: #{tpu_custom_call.1} parent=1 // pred_check
      _
    $region7: #{tpu_custom_call.1} parent=1 // pred_check_branch
      %31 = sbr.rel (0) target = $region9
    $region8: #{tpu_custom_call.1} parent=1 // pred_region
      %32 = dma.done [#allocation6], 1536
    $region9: #{tpu_custom_call.1} parent=1 // pred_fallthru
      _
    %s33 = sld [smem:[#allocation3]]
    %s34 = sld [smem:[#allocation3 + $0x1]]
    %s35 = sld [smem:[#allocation3 + $0x2]]
    %s36 = sld [smem:[#allocation3 + $0x3]]
    %s37 = sld [smem:[#allocation3 + $0x4]]
    %s38 = sld [smem:[#allocation3 + $0x5]]
    %s39 = sld [smem:[#allocation3 + $0x6]]
    %s40 = sld [smem:[#allocation3 + $0x7]]
    %s41 = sld [smem:[#allocation3 + $0x8]]
    %s42 = sld [smem:[#allocation4]]
    %s43 = sld [smem:[#allocation4 + $0x1]]
    %s44 = sld [smem:[#allocation4 + $0x2]]
    %s45 = sld [smem:[#allocation4 + $0x3]]
    %s46 = sld [smem:[#allocation4 + $0x4]]
    %s47 = sld [smem:[#allocation4 + $0x5]]
    %s48 = sld [smem:[#allocation4 + $0x6]]
    %s49 = sld [smem:[#allocation4 + $0x7]]
    %s50 = sld [smem:[#allocation4 + $0x8]]
    %v51 = vld [vmem:[#allocation5] sm:$0xff]
    %v52 = vld [vmem:[#allocation5 + $0x8] sm:$0xff]
    %v53 = vld [vmem:[#allocation5 + $0x10] sm:$0xff]
    %v54 = vld [vmem:[#allocation5 + $0x18] sm:$0xff]
    %s55 = sadd.s32 0, 32
    %s56 = scalar_lea.vmem [#allocation5], %s55
    %v57 = vld [vmem:[%s56] sm:$0xff]
    %v58 = vld [vmem:[%s56 + $0x8] sm:$0xff]
    %v59 = vld [vmem:[%s56 + $0x10] sm:$0xff]
    %v60 = vld [vmem:[%s56 + $0x18] sm:$0xff]
    %s61 = sadd.s32 0, 64
    %s62 = scalar_lea.vmem [#allocation5], %s61
    %v63 = vld [vmem:[%s62] sm:$0xff]
    %v64 = vld [vmem:[%s62 + $0x8] sm:$0xff]
    %v65 = vld [vmem:[%s62 + $0x10] sm:$0xff]
    %v66 = vld [vmem:[%s62 + $0x18] sm:$0xff]
    %v67 = vstv %s33
    %v68 = vmul.f32 %v67, %v51
    %v69 = vmul.f32 %v67, %v52
    %v70 = vmul.f32 %v67, %v53
    %v71 = vmul.f32 %v67, %v54
    %v72 = vstv %s34
    %v73 = vmul.f32 %v72, %v57
    %v74 = vmul.f32 %v72, %v58
    %v75 = vmul.f32 %v72, %v59
    %v76 = vmul.f32 %v72, %v60
    %v77 = vadd.f32 %v68, %v73
    %v78 = vadd.f32 %v69, %v74
    %v79 = vadd.f32 %v70, %v75
    %v80 = vadd.f32 %v71, %v76
    %v81 = vstv %s35
    %v82 = vmul.f32 %v81, %v63
    %v83 = vmul.f32 %v81, %v64
    %v84 = vmul.f32 %v81, %v65
    %v85 = vmul.f32 %v81, %v66
    %v86 = vadd.f32 %v77, %v82
    %v87 = vadd.f32 %v78, %v83
    %v88 = vadd.f32 %v79, %v84
    %v89 = vadd.f32 %v80, %v85
    %v90 = vstv %s36
    %v91 = vmul.f32 %v90, %v51
    %v92 = vmul.f32 %v90, %v52
    %v93 = vmul.f32 %v90, %v53
    %v94 = vmul.f32 %v90, %v54
    %v95 = vstv %s37
    %v96 = vmul.f32 %v95, %v57
    %v97 = vmul.f32 %v95, %v58
    %v98 = vmul.f32 %v95, %v59
    %v99 = vmul.f32 %v95, %v60
    %v100 = vadd.f32 %v91, %v96
    %v101 = vadd.f32 %v92, %v97
    %v102 = vadd.f32 %v93, %v98
    %v103 = vadd.f32 %v94, %v99
    %v104 = vstv %s38
    %v105 = vmul.f32 %v104, %v63
    %v106 = vmul.f32 %v104, %v64
    %v107 = vmul.f32 %v104, %v65
    %v108 = vmul.f32 %v104, %v66
    %v109 = vadd.f32 %v100, %v105
    %v110 = vadd.f32 %v101, %v106
    %v111 = vadd.f32 %v102, %v107
    %v112 = vadd.f32 %v103, %v108
    %v113 = vstv %s39
    %v114 = vmul.f32 %v113, %v51
    %v115 = vmul.f32 %v113, %v52
    %v116 = vmul.f32 %v113, %v53
    %v117 = vmul.f32 %v113, %v54
    %v118 = vstv %s40
    %v119 = vmul.f32 %v118, %v57
    %v120 = vmul.f32 %v118, %v58
    %v121 = vmul.f32 %v118, %v59
    %v122 = vmul.f32 %v118, %v60
    %v123 = vadd.f32 %v114, %v119
    %v124 = vadd.f32 %v115, %v120
    %v125 = vadd.f32 %v116, %v121
    %v126 = vadd.f32 %v117, %v122
    %v127 = vstv %s41
    %v128 = vmul.f32 %v127, %v63
    %v129 = vmul.f32 %v127, %v64
    %v130 = vmul.f32 %v127, %v65
    %v131 = vmul.f32 %v127, %v66
    %v132 = vadd.f32 %v123, %v128
    %v133 = vadd.f32 %v124, %v129
    %v134 = vadd.f32 %v125, %v130
    %v135 = vadd.f32 %v126, %v131
    %v136 = vmul.f32 %v57, %v132
    %v137 = vmul.f32 %v58, %v133
    %v138 = vmul.f32 %v59, %v134
    %v139 = vmul.f32 %v60, %v135
    %v140 = vmul.f32 %v63, %v109
    %v141 = vmul.f32 %v64, %v110
    %v142 = vmul.f32 %v65, %v111
    %v143 = vmul.f32 %v66, %v112
    %v144 = vsub.f32 %v136, %v140
    %v145 = vsub.f32 %v137, %v141
    %v146 = vsub.f32 %v138, %v142
    %v147 = vsub.f32 %v139, %v143
    %v148 = vmul.f32 %v63, %v86
    %v149 = vmul.f32 %v64, %v87
    %v150 = vmul.f32 %v65, %v88
    %v151 = vmul.f32 %v66, %v89
    %v152 = vmul.f32 %v51, %v132
    %v153 = vmul.f32 %v52, %v133
    %v154 = vmul.f32 %v53, %v134
    %v155 = vmul.f32 %v54, %v135
    %v156 = vsub.f32 %v148, %v152
    %v157 = vsub.f32 %v149, %v153
    %v158 = vsub.f32 %v150, %v154
    %v159 = vsub.f32 %v151, %v155
    %v160 = vmul.f32 %v51, %v109
    %v161 = vmul.f32 %v52, %v110
    %v162 = vmul.f32 %v53, %v111
    %v163 = vmul.f32 %v54, %v112
    %v164 = vmul.f32 %v57, %v86
    %v165 = vmul.f32 %v58, %v87
    %v166 = vmul.f32 %v59, %v88
    %v167 = vmul.f32 %v60, %v89
    %v168 = vsub.f32 %v160, %v164
    %v169 = vsub.f32 %v161, %v165
    %v170 = vsub.f32 %v162, %v166
    %v171 = vsub.f32 %v163, %v167
    %v172 = vstv %s42
    %v173 = vmul.f32 %v172, %v144
    %v174 = vmul.f32 %v172, %v145
    %v175 = vmul.f32 %v172, %v146
    %v176 = vmul.f32 %v172, %v147
    %v177 = vstv %s43
    %v178 = vmul.f32 %v177, %v156
    %v179 = vmul.f32 %v177, %v157
    %v180 = vmul.f32 %v177, %v158
    %v181 = vmul.f32 %v177, %v159
    %v182 = vadd.f32 %v173, %v178
    %v183 = vadd.f32 %v174, %v179
    %v184 = vadd.f32 %v175, %v180
    %v185 = vadd.f32 %v176, %v181
    %v186 = vstv %s44
    %v187 = vmul.f32 %v186, %v168
    %v188 = vmul.f32 %v186, %v169
    %v189 = vmul.f32 %v186, %v170
    %v190 = vmul.f32 %v186, %v171
    %v191 = vadd.f32 %v182, %v187
    %v192 = vadd.f32 %v183, %v188
    %v193 = vadd.f32 %v184, %v189
    %v194 = vadd.f32 %v185, %v190
    %195 = vst [vmem:[#allocation8] sm:$0xff] %v191
    %196 = vst [vmem:[#allocation8 + $0x8] sm:$0xff] %v192
    %197 = vst [vmem:[#allocation8 + $0x10] sm:$0xff] %v193
    %198 = vst [vmem:[#allocation8 + $0x18] sm:$0xff] %v194
    %v199 = vstv %s45
    %v200 = vmul.f32 %v199, %v144
    %v201 = vmul.f32 %v199, %v145
    %v202 = vmul.f32 %v199, %v146
    %v203 = vmul.f32 %v199, %v147
    %v204 = vstv %s46
    %v205 = vmul.f32 %v204, %v156
    %v206 = vmul.f32 %v204, %v157
    %v207 = vmul.f32 %v204, %v158
    %v208 = vmul.f32 %v204, %v159
    %v209 = vadd.f32 %v200, %v205
    %v210 = vadd.f32 %v201, %v206
    %v211 = vadd.f32 %v202, %v207
    %v212 = vadd.f32 %v203, %v208
    %v213 = vstv %s47
    %v214 = vmul.f32 %v213, %v168
    %v215 = vmul.f32 %v213, %v169
    %v216 = vmul.f32 %v213, %v170
    %v217 = vmul.f32 %v213, %v171
    %v218 = vadd.f32 %v209, %v214
    %v219 = vadd.f32 %v210, %v215
    %v220 = vadd.f32 %v211, %v216
    %v221 = vadd.f32 %v212, %v217
    %s222 = scalar_lea.vmem [#allocation8], %s55
    %223 = vst [vmem:[%s222] sm:$0xff] %v218
    %224 = vst [vmem:[%s222 + $0x8] sm:$0xff] %v219
    %225 = vst [vmem:[%s222 + $0x10] sm:$0xff] %v220
    %226 = vst [vmem:[%s222 + $0x18] sm:$0xff] %v221
    %v227 = vstv %s48
    %v228 = vmul.f32 %v227, %v144
    %v229 = vmul.f32 %v227, %v145
    %v230 = vmul.f32 %v227, %v146
    %v231 = vmul.f32 %v227, %v147
    %v232 = vstv %s49
    %v233 = vmul.f32 %v232, %v156
    %v234 = vmul.f32 %v232, %v157
    %v235 = vmul.f32 %v232, %v158
    %v236 = vmul.f32 %v232, %v159
    %v237 = vadd.f32 %v228, %v233
    %v238 = vadd.f32 %v229, %v234
    %v239 = vadd.f32 %v230, %v235
    %v240 = vadd.f32 %v231, %v236
    %v241 = vstv %s50
    %v242 = vmul.f32 %v241, %v168
    %v243 = vmul.f32 %v241, %v169
    %v244 = vmul.f32 %v241, %v170
    %v245 = vmul.f32 %v241, %v171
    %v246 = vadd.f32 %v237, %v242
    %v247 = vadd.f32 %v238, %v243
    %v248 = vadd.f32 %v239, %v244
    %v249 = vadd.f32 %v240, %v245
    %s250 = scalar_lea.vmem [#allocation8], %s61
    %251 = vst [vmem:[%s250] sm:$0xff] %v246
    %252 = vst [vmem:[%s250 + $0x8] sm:$0xff] %v247
    %253 = vst [vmem:[%s250 + $0x10] sm:$0xff] %v248
    %254 = vst [vmem:[%s250 + $0x18] sm:$0xff] %v249
    // Predicated region
    $region10: #{tpu_custom_call.1} parent=1 // pred_check
      _
    $region11: #{tpu_custom_call.1} parent=1 // pred_check_branch
      %256 = sbr.rel (0) target = $region13
    $region12: #{tpu_custom_call.1} parent=1 // pred_region
      %s258 = ssub.s32 1536, 1536
      %259 = vsyncadd [#allocation7], %s258
      %s260 = sshll.u32 [#allocation8], 4
      %s261 = int_to_ptr.vmem [resolvable:$true] %s260
      %266 = dma.vmem_to_hbm [thread:$0]  %s261, 1536, %s3, [#allocation7], 128, 128, 8
    $region13: #{tpu_custom_call.1} parent=1 // pred_fallthru
      _
    // Predicated region
    $region14: #{tpu_custom_call.1} parent=1 // pred_check
      _
    $region15: #{tpu_custom_call.1} parent=1 // pred_check_branch
      %268 = sbr.rel (0) target = $region17
    $region16: #{tpu_custom_call.1} parent=1 // pred_region
      %269 = dma.done [#allocation7], 1536
    $region17: #{tpu_custom_call.1} parent=1 // pred_fallthru
      _
    %270 = vsyncpa [#allocation6], 1
    %271 = vsyncpa [#allocation7], 1

</llo_original>
